<compile_context>
chip_gen: v5e
topology: v5e:2x2
jax: 0.10.0
libtpu: 0.0.40
codegen_flags: <defaults>
</compile_context>

<pallas_src>
import functools

import jax
import jax.numpy as jnp
from jax.experimental import pallas as pl
from jax.experimental.pallas import tpu as pltpu


# ------------------------------ helpers ------------------------------------ #

def _pick_tile(dim, bytes_per_unit, target_bytes, multiple_of=1):
    """Largest divisor of `dim` that is either `dim` itself or a multiple of
    `multiple_of` (BlockSpec sublane constraint) and fits `target_bytes`.
    Falls back to the smallest legal divisor if nothing fits."""
    cands = [d for d in range(1, dim + 1)
             if dim % d == 0 and (d == dim or d % multiple_of == 0)]
    fit = [d for d in cands if d * bytes_per_unit <= target_bytes]
    return max(fit) if fit else min(cands)


def _vmem_limit_bytes(*block_bytes):
    # ~2x for double-buffered blocks plus headroom for f32 temporaries and the
    # resident parameter arrays; capped to stay inside v7x's 64 MiB/TC VMEM.
    need = 3 * sum(block_bytes) + (8 << 20)
    return int(min(max(need, 32 << 20), 64 << 20))


def _sum_last2(x):
    # Reduce the last two axes, keepdims, as two single-axis XLU reductions.
    return jnp.sum(jnp.sum(x, axis=-1, keepdims=True), axis=-2, keepdims=True)


# ----------------------------- kernels ------------------------------------ #

def _s0_kernel(x_ref, v_ref, w_ref, b_ref, o_ref, *, eps, count, tg):
    # x_ref: (1, TG, Cg, HW) block; v/w/b refs: full (G, Cg, 1), VMEM-resident.
    g0 = pl.multiple_of(pl.program_id(1) * tg, tg)
    x = x_ref[...].astype(jnp.float32)

    # One-pass unbiased variance in f32: (sum(x^2) - sum(x)^2/n) / (n - 1).
    s = _sum_last2(x)                                   # (1, TG, 1, 1)
    ss = _sum_last2(x * x)
    var = (ss - s * s / count) / (count - 1.0)          # torch.var unbiased
    var = jnp.maximum(var, 0.0)                         # guard cancellation
    inv_std = jax.lax.rsqrt(var + eps)                  # EUP rsqrt (no divide)

    v = v_ref[pl.ds(g0, tg)].astype(jnp.float32)[None]  # (1, TG, Cg, 1)
    w = w_ref[pl.ds(g0, tg)].astype(jnp.float32)[None]
    b = b_ref[pl.ds(g0, tg)].astype(jnp.float32)[None]

    scale = w * inv_std                                 # tiny per-channel mul
    y = x * jax.nn.sigmoid(v * x) * scale + b
    o_ref[...] = y.astype(o_ref.dtype)


def _b0_kernel(x_ref, rv_ref, v_ref, w_ref, b_ref, o_ref, *, eps, hw, tc):
    # x_ref: (1, TC, HW) block; rv/v/w/b refs: full (C, 1), VMEM-resident.
    c0 = pl.multiple_of(pl.program_id(1) * tc, tc)
    x = x_ref[...].astype(jnp.float32)

    s = jnp.sum(x, axis=-1, keepdims=True)              # (1, TC, 1)
    ss = jnp.sum(x * x, axis=-1, keepdims=True)
    var = (ss - s * s / hw) / (hw - 1.0)                # torch.var unbiased
    var = jnp.maximum(var, 0.0)
    inst_std = jnp.sqrt(var + eps)                      # per-channel only
    # TODO(synk): torch instance_std resets the WHOLE var tensor to zeros if
    # any NaN is present; that global branch is not reproduced here.

    rv = rv_ref[pl.ds(c0, tc)].astype(jnp.float32)[None]   # (1, TC, 1)
    v = v_ref[pl.ds(c0, tc)].astype(jnp.float32)[None]
    w = w_ref[pl.ds(c0, tc)].astype(jnp.float32)[None]
    b = b_ref[pl.ds(c0, tc)].astype(jnp.float32)[None]

    den = jnp.maximum(jnp.sqrt(rv + eps), v * x + inst_std)
    # Full-block divide moved to the (otherwise idle) EUP reciprocal.
    y = x * pl.reciprocal(den, approx=False) * w + b
    o_ref[...] = y.astype(o_ref.dtype)


# ----------------------------- wrappers ------------------------------------ #

def evo_norm_s0(x, v, weight, bias, *, groups, eps, block_target_bytes=4 << 20):
    N, C, H, W = x.shape
    assert C % groups == 0
    Cg = C // groups
    HW = H * W

    x_r = x.reshape(N, groups, Cg, HW)
    v_r = v.reshape(groups, Cg, 1)
    w_r = weight.reshape(groups, Cg, 1)
    b_r = bias.reshape(groups, Cg, 1)

    # Whole sample per step if it fits the VMEM budget, otherwise tile the
    # group axis (group statistics never cross groups, so this stays exact).
    group_bytes = Cg * HW * x.dtype.itemsize
    tg = _pick_tile(groups, group_bytes, block_target_bytes)
    grid = (N, groups // tg)

    x_block = (1, tg, Cg, HW)
    block_bytes = tg * group_bytes
    kernel = functools.partial(_s0_kernel, eps=float(eps),
                               count=float(Cg * HW), tg=tg)
    out = pl.pallas_call(
        kernel,
        out_shape=jax.ShapeDtypeStruct((N, groups, Cg, HW), x.dtype),
        grid=grid,
        in_specs=[
            pl.BlockSpec(x_block, lambda n, g: (n, g, 0, 0)),
            # params: full arrays, constant index_map -> fetched once, resident
            pl.BlockSpec((groups, Cg, 1), lambda n, g: (0, 0, 0)),
            pl.BlockSpec((groups, Cg, 1), lambda n, g: (0, 0, 0)),
            pl.BlockSpec((groups, Cg, 1), lambda n, g: (0, 0, 0)),
        ],
        out_specs=pl.BlockSpec(x_block, lambda n, g: (n, g, 0, 0)),
        compiler_params=pltpu.CompilerParams(
            dimension_semantics=("parallel", "parallel"),
            vmem_limit_bytes=_vmem_limit_bytes(block_bytes, block_bytes)),
    )(x_r, v_r, w_r, b_r)
    return out.reshape(N, C, H, W)


def evo_norm_b0_eval(x, running_var, v, weight, bias, *, eps,
                     block_target_bytes=4 << 20):
    # TODO(synk): training-mode b0 (batch-var + in-place running_var momentum
    # update) is a stateful buffer mutation; only the eval path is kernelized.
    N, C, H, W = x.shape
    HW = H * W

    x_r = x.reshape(N, C, HW)
    rv_r = running_var.reshape(C, 1)
    v_r = v.reshape(C, 1)
    w_r = weight.reshape(C, 1)
    b_r = bias.reshape(C, 1)

    # Channel tiling bounds per-step VMEM and feeds both v7x TensorCores.
    chan_bytes = HW * x.dtype.itemsize
    tc = _pick_tile(C, chan_bytes, block_target_bytes, multiple_of=8)
    grid = (N, C // tc)

    x_block = (1, tc, HW)
    block_bytes = tc * chan_bytes
    kernel = functools.partial(_b0_kernel, eps=float(eps), hw=float(HW), tc=tc)
    out = pl.pallas_call(
        kernel,
        out_shape=jax.ShapeDtypeStruct((N, C, HW), x.dtype),
        grid=grid,
        in_specs=[
            pl.BlockSpec(x_block, lambda n, c: (n, c, 0)),
            # params: full arrays, constant index_map -> fetched once, resident
            pl.BlockSpec((C, 1), lambda n, c: (0, 0)),
            pl.BlockSpec((C, 1), lambda n, c: (0, 0)),
            pl.BlockSpec((C, 1), lambda n, c: (0, 0)),
            pl.BlockSpec((C, 1), lambda n, c: (0, 0)),
        ],
        out_specs=pl.BlockSpec(x_block, lambda n, c: (n, c, 0)),
        compiler_params=pltpu.CompilerParams(
            dimension_semantics=("parallel", "parallel"),
            vmem_limit_bytes=_vmem_limit_bytes(block_bytes, block_bytes)),
    )(x_r, rv_r, v_r, w_r, b_r)
    return out.reshape(N, C, H, W)


# --------------------------- pure-JAX reference ----------------------------- #

def _ref_s0(x, v, weight, bias, groups, eps):
    N, C, H, W = x.shape
    xg = x.reshape(N, groups, C // groups, H, W).astype(jnp.float32)
    var = jnp.var(xg, axis=(2, 3, 4), keepdims=True, ddof=1)
    std = jnp.sqrt(var + eps)
    std = jnp.broadcast_to(std, xg.shape).reshape(N, C, H, W)
    xf = x.astype(jnp.float32)
    return xf * jax.nn.sigmoid(v * xf) / std * weight + bias


def _ref_b0(x, running_var, v, weight, bias, eps):
    xf = x.astype(jnp.float32)
    var = jnp.var(xf, axis=(2, 3), keepdims=True, ddof=1)
    inst_std = jnp.sqrt(var + eps)
    den = jnp.maximum(jnp.sqrt(running_var + eps), v * xf + inst_std)
    return xf / den * weight + bias


# --------------------------------- main ------------------------------------ #

if __name__ == "__main__":
    key = jax.random.PRNGKey(0)
    N, C, H, W = 2, 32, 16, 16
    groups = 4
    eps = 1e-5

    x = jax.random.normal(key, (N, C, H, W), dtype=jnp.float32)

    # _EvoNorm.reset_parameters: weight=1, bias=0, v=1; buffer running_var=1
    weight = jnp.ones((1, C, 1, 1), jnp.float32)
    bias = jnp.zeros((1, C, 1, 1), jnp.float32)
    v = jnp.ones((1, C, 1, 1), jnp.float32)
    running_var = jnp.ones((1, C, 1, 1), jnp.float32)

    # prefix = 's0'
    y_s0 = evo_norm_s0(x, v, weight, bias, groups=groups, eps=eps)
    y_s0 = jax.block_until_ready(y_s0)
    ref_s0 = _ref_s0(x, v, weight, bias, groups, eps)
    # One-pass f32 statistics -> f32-appropriate tolerance.
    assert jnp.allclose(y_s0, ref_s0, atol=1e-4, rtol=1e-4), "s0 mismatch"

    # prefix = 'b0', eval mode
    y_b0 = evo_norm_b0_eval(x, running_var, v, weight, bias, eps=eps)
    y_b0 = jax.block_until_ready(y_b0)
    ref_b0 = _ref_b0(x, running_var, v, weight, bias, eps)
    assert jnp.allclose(y_b0, ref_b0, atol=1e-4, rtol=1e-4), "b0 mismatch"

    print("KERNEL_OK")
</pallas_src>

<mosaic_0001>
module attributes {stable_mosaic.version = 11 : i64} {
  func.func @_s0_kernel(%arg0: i32, %arg1: i32, %arg2: memref<1x4x8x256xf32, #tpu.memory_space<vmem>>, %arg3: memref<4x8x1xf32, #tpu.memory_space<vmem>>, %arg4: memref<4x8x1xf32, #tpu.memory_space<vmem>>, %arg5: memref<4x8x1xf32, #tpu.memory_space<vmem>>, %arg6: memref<1x4x8x256xf32, #tpu.memory_space<vmem>>) attributes {dimension_semantics = [#tpu.dimension_semantics<parallel>, #tpu.dimension_semantics<parallel>], iteration_bounds = array<i64: 2, 1>, scalar_prefetch = 0 : i64, scratch_operands = 0 : i64, tpu.core_type = #tpu.core_type<tc>, window_params = [{transform_indices = @transform_0, window_bounds = array<i64: 1, 4, 8, 256>}, {pipeline_mode = #tpu.pipeline_mode<synchronous>, transform_indices = @transform_1, window_bounds = array<i64: 4, 8, 1>}, {pipeline_mode = #tpu.pipeline_mode<synchronous>, transform_indices = @transform_2, window_bounds = array<i64: 4, 8, 1>}, {pipeline_mode = #tpu.pipeline_mode<synchronous>, transform_indices = @transform_3, window_bounds = array<i64: 4, 8, 1>}, {transform_indices = @transform_4, window_bounds = array<i64: 1, 4, 8, 256>}]} {
    %c4_i32 = arith.constant 4 : i32
    %0 = arith.muli %arg1, %c4_i32 : i32
    %1 = tpu.assume_multiple %0, 4 : i32
    %c0 = arith.constant 0 : index
    %c0_0 = arith.constant 0 : index
    %c0_1 = arith.constant 0 : index
    %c0_2 = arith.constant 0 : index
    %2 = vector.load %arg2[%c0, %c0_0, %c0_1, %c0_2] : memref<1x4x8x256xf32, #tpu.memory_space<vmem>>, vector<1x4x8x256xf32>
    %cst = arith.constant dense<0.000000e+00> : vector<1x4x8xf32>
    %3 = vector.multi_reduction <add>, %2, %cst [3] : vector<1x4x8x256xf32> to vector<1x4x8xf32>
    %4 = vector.shape_cast %3 : vector<1x4x8xf32> to vector<1x4x8x1xf32>
    %cst_3 = arith.constant dense<0.000000e+00> : vector<1x4x1xf32>
    %5 = vector.multi_reduction <add>, %4, %cst_3 [2] : vector<1x4x8x1xf32> to vector<1x4x1xf32>
    %6 = vector.shape_cast %5 : vector<1x4x1xf32> to vector<1x4x1x1xf32>
    %7 = arith.mulf %2, %2 : vector<1x4x8x256xf32>
    %cst_4 = arith.constant dense<0.000000e+00> : vector<1x4x8xf32>
    %8 = vector.multi_reduction <add>, %7, %cst_4 [3] : vector<1x4x8x256xf32> to vector<1x4x8xf32>
    %9 = vector.shape_cast %8 : vector<1x4x8xf32> to vector<1x4x8x1xf32>
    %cst_5 = arith.constant dense<0.000000e+00> : vector<1x4x1xf32>
    %10 = vector.multi_reduction <add>, %9, %cst_5 [2] : vector<1x4x8x1xf32> to vector<1x4x1xf32>
    %11 = vector.shape_cast %10 : vector<1x4x1xf32> to vector<1x4x1x1xf32>
    %12 = arith.mulf %6, %6 : vector<1x4x1x1xf32>
    %cst_6 = arith.constant 2.048000e+03 : f32
    %13 = vector.broadcast %cst_6 : f32 to vector<1x4x1x1xf32>
    %14 = arith.divf %12, %13 : vector<1x4x1x1xf32>
    %15 = arith.subf %11, %14 : vector<1x4x1x1xf32>
    %cst_7 = arith.constant 2.047000e+03 : f32
    %16 = vector.broadcast %cst_7 : f32 to vector<1x4x1x1xf32>
    %17 = arith.divf %15, %16 : vector<1x4x1x1xf32>
    %cst_8 = arith.constant 0.000000e+00 : f32
    %18 = vector.broadcast %cst_8 : f32 to vector<1x4x1x1xf32>
    %19 = arith.maximumf %17, %18 : vector<1x4x1x1xf32>
    %cst_9 = arith.constant 9.99999974E-6 : f32
    %20 = vector.broadcast %cst_9 : f32 to vector<1x4x1x1xf32>
    %21 = arith.addf %19, %20 : vector<1x4x1x1xf32>
    %22 = math.rsqrt %21 : vector<1x4x1x1xf32>
    %23 = arith.index_cast %1 : i32 to index
    %c0_10 = arith.constant 0 : index
    %c0_11 = arith.constant 0 : index
    %24 = vector.load %arg3[%23, %c0_10, %c0_11] : memref<4x8x1xf32, #tpu.memory_space<vmem>>, vector<4x8x1xf32>
    %25 = vector.shape_cast %24 : vector<4x8x1xf32> to vector<1x4x8x1xf32>
    %26 = arith.index_cast %1 : i32 to index
    %c0_12 = arith.constant 0 : index
    %c0_13 = arith.constant 0 : index
    %27 = vector.load %arg4[%26, %c0_12, %c0_13] : memref<4x8x1xf32, #tpu.memory_space<vmem>>, vector<4x8x1xf32>
    %28 = vector.shape_cast %27 : vector<4x8x1xf32> to vector<1x4x8x1xf32>
    %29 = arith.index_cast %1 : i32 to index
    %c0_14 = arith.constant 0 : index
    %c0_15 = arith.constant 0 : index
    %30 = vector.load %arg5[%29, %c0_14, %c0_15] : memref<4x8x1xf32, #tpu.memory_space<vmem>>, vector<4x8x1xf32>
    %31 = vector.shape_cast %30 : vector<4x8x1xf32> to vector<1x4x8x1xf32>
    %32 = vector.broadcast %22 : vector<1x4x1x1xf32> to vector<1x4x8x1xf32>
    %33 = arith.mulf %28, %32 : vector<1x4x8x1xf32>
    %34 = vector.broadcast %25 : vector<1x4x8x1xf32> to vector<1x4x8x256xf32>
    %35 = arith.mulf %34, %2 : vector<1x4x8x256xf32>
    %36 = arith.negf %35 : vector<1x4x8x256xf32>
    %37 = math.exp %36 : vector<1x4x8x256xf32>
    %cst_16 = arith.constant 1.000000e+00 : f32
    %38 = vector.broadcast %cst_16 : f32 to vector<1x4x8x256xf32>
    %39 = arith.addf %38, %37 : vector<1x4x8x256xf32>
    %40 = arith.divf %38, %39 : vector<1x4x8x256xf32>
    %41 = arith.mulf %2, %40 : vector<1x4x8x256xf32>
    %42 = vector.broadcast %33 : vector<1x4x8x1xf32> to vector<1x4x8x256xf32>
    %43 = arith.mulf %41, %42 : vector<1x4x8x256xf32>
    %44 = vector.broadcast %31 : vector<1x4x8x1xf32> to vector<1x4x8x256xf32>
    %45 = arith.addf %43, %44 : vector<1x4x8x256xf32>
    %c0_17 = arith.constant 0 : index
    %c0_18 = arith.constant 0 : index
    %c0_19 = arith.constant 0 : index
    %c0_20 = arith.constant 0 : index
    %46 = vector.load %arg6[%c0_17, %c0_18, %c0_19, %c0_20] : memref<1x4x8x256xf32, #tpu.memory_space<vmem>>, vector<1x4x8x256xf32>
    tpu.vector_store %arg6[%c0_17, %c0_18, %c0_19, %c0_20], %45 {strides = array<i32>} : memref<1x4x8x256xf32, #tpu.memory_space<vmem>>, vector<1x4x8x256xf32>,
    return
  }
  func.func @transform_0(%arg0: i32, %arg1: i32) -> (i32, i32, i32, i32) {
    %c0_i32 = arith.constant 0 : i32
    %c0_i32_0 = arith.constant 0 : i32
    %c0_i32_1 = arith.constant 0 : i32
    return %arg0, %arg1, %c0_i32, %c0_i32_0 : i32, i32, i32, i32
  }
  func.func @transform_1(%arg0: i32, %arg1: i32) -> (i32, i32, i32) {
    %c0_i32 = arith.constant 0 : i32
    %c0_i32_0 = arith.constant 0 : i32
    %c0_i32_1 = arith.constant 0 : i32
    %c0_i32_2 = arith.constant 0 : i32
    return %c0_i32, %c0_i32_0, %c0_i32_1 : i32, i32, i32
  }
  func.func @transform_2(%arg0: i32, %arg1: i32) -> (i32, i32, i32) {
    %c0_i32 = arith.constant 0 : i32
    %c0_i32_0 = arith.constant 0 : i32
    %c0_i32_1 = arith.constant 0 : i32
    %c0_i32_2 = arith.constant 0 : i32
    return %c0_i32, %c0_i32_0, %c0_i32_1 : i32, i32, i32
  }
  func.func @transform_3(%arg0: i32, %arg1: i32) -> (i32, i32, i32) {
    %c0_i32 = arith.constant 0 : i32
    %c0_i32_0 = arith.constant 0 : i32
    %c0_i32_1 = arith.constant 0 : i32
    %c0_i32_2 = arith.constant 0 : i32
    return %c0_i32, %c0_i32_0, %c0_i32_1 : i32, i32, i32
  }
  func.func @transform_4(%arg0: i32, %arg1: i32) -> (i32, i32, i32, i32) {
    %c0_i32 = arith.constant 0 : i32
    %c0_i32_0 = arith.constant 0 : i32
    %c0_i32_1 = arith.constant 0 : i32
    return %arg0, %arg1, %c0_i32, %c0_i32_0 : i32, i32, i32, i32
  }
}

</mosaic_0001>

<llo_original>
// kernel: tpu_custom_call.1
$region0: #{tpu_custom_call.1}
  #allocation0 [shape = 'u32[]', space=smem, size = 0x4, offset = 0x4, fixed_abs, tag = 'smem constant byte address 0x4 - core index']
  #allocation1 [shape = 'u32[72,128]{1,0:T(1,128)}', space=vmem, size = 0x9000, scoped, tag = 'internal scratch']
  %s0 = inlined_call_operand.hbm [shape: f32[2,4,8,256], index: 0, kind: input, shape index: {}]
  %s1 = inlined_call_operand.vmem [shape: f32[4,8,1], index: 1, kind: input, shape index: {}]
  %s2 = inlined_call_operand.vmem [shape: f32[4,8,1], index: 2, kind: input, shape index: {}]
  %s3 = inlined_call_operand.vmem [shape: f32[4,8,1], index: 3, kind: input, shape index: {}]
  %s4 = inlined_call_operand.hbm [shape: f32[2,4,8,256], index: 4, kind: output, shape index: {}]
  %s5 = sld [smem:[#allocation0]]
  $region53: #{tpu_custom_call.1} parent=0
    _
  %s7 = ssub.s32 1, %s5
  %s8 = scalar_select 0, %s7, %s5
  $region1: #{tpu_custom_call.1} parent=0
    #allocation2 [shape = 'u8[65536]{0}', space=vmem, size = 0x10000, scoped, tag = 'input window, operand 0']
    #allocation3 [shape = 's32[2]{0}', space=sflag, size = 0x8, scoped, tag = 'scoped memory for tpu_custom_call.1']
    #allocation4 [shape = 's32[2]{0}', space=sflag, size = 0x8, scoped, tag = 'scoped memory for tpu_custom_call.1']
    #allocation5 [shape = 'u8[65536]{0}', space=vmem, size = 0x10000, scoped, tag = 'output window, operand 0']
    %9 = vsyncpa [#allocation3], 0
    %s10 = scalar_lea.sflag [#allocation3], 1
    %11 = vsyncpa %s10, 0
    %12 = vsyncpa [#allocation4], 0
    %s13 = scalar_lea.sflag [#allocation4], 1
    %14 = vsyncpa %s13, 0
    loop: start=0, step=1, limit=4
    $region2: #{tpu_custom_call.1} parent=1 // loop_pre_header
      _
    $region3: #{tpu_custom_call.1} parent=1 // loop_header
      %s16 = sphi 0, %s20
      %p17 = scmp.ge.s32.totalorder %s16, 4
      %s23 = sphi 0, %s35
      %s24 = sphi 0, %s31
      %s25 = sphi 0, %s23
      %s26 = sphi 0, %s24
      %s27 = sphi 0, %s25
      %s28 = sphi 0, %s26
      %s40 = sphi 0, %s42
      %s43 = sphi 0, %s40
      %s44 = sphi 0, %s43
      %s60 = sphi 0, %s44
      %s64 = sphi 0, %s64
      %s66 = sphi 0, %s64
      %s67 = sphi 0, %s66
      %s81 = sphi 0, %s67
      %s85 = sphi 0, %s85
      %s87 = sphi 0, %s85
      %s88 = sphi 0, %s87
      %s102 = sphi 0, %s88
      %s106 = sphi 0, %s106
      %s108 = sphi 0, %s106
      %s109 = sphi 0, %s108
      %s123 = sphi 0, %s109
      %s131 = sphi 0, %s133
      %s134 = sphi 0, %s131
      %s135 = sphi 0, %s134
      %s151 = sphi 0, %s135
    $region4: #{tpu_custom_call.1} parent=1 // loop_header_branch
      %19 = sbr.rel (%p17) target = $region8
    $region5: #{tpu_custom_call.1} parent=1 // loop_body
      %s21 = ssub.s32 %s16, 1
      %s22 = ssub.s32 %s16, 2
      %s29 = sadd.s32 1, %s24
      %p30 = scmp.ge.s32.totalorder %s29, 1
      %s31 = scalar_select %p30, 0, %s29
      %s32 = sadd.s32 1, %s23
      %s33 = scalar_select %p30, %s32, %s23
      %p34 = scmp.ge.s32.totalorder %s33, 2
      %s35 = scalar_select %p34, 0, %s33
      %s36 = ssub.s32 %s23, %s35
      %s37 = ssub.s32 %s24, %s31
      %s38 = sor.u32 %s36, %s37
      %p39 = scmp.eq.s32.totalorder %s38, 0
      %s41 = sadd.s32 %s40, 1
      %s42 = scalar_select %p39, %s40, %s41
      %p45 = pneg %p39
      %p46 = scmp.eq.s32.totalorder %s16, 1
      %p47 = por %p45, %p46
      %p48 = scmp.ne.s32.totalorder %s40, %s43
      %p49 = scmp.eq.s32.totalorder %s16, 0
      %p50 = por %p48, %p49
      %p51 = scmp.ne.s32.totalorder %s40, %s43
      %p52 = scmp.eq.s32.totalorder %s21, 1
      %p53 = por %p51, %p52
      %p54 = scmp.ne.s32.totalorder %s43, %s44
      %p55 = scmp.eq.s32.totalorder %s21, 0
      %p56 = por %p54, %p55
      %p57 = scmp.ne.s32.totalorder %s43, %s44
      %p58 = scmp.eq.s32.totalorder %s22, 1
      %p59 = por %p57, %p58
      %p61 = scmp.ne.s32.totalorder %s44, %s60
      %p62 = scmp.eq.s32.totalorder %s22, 0
      %p63 = por %p61, %p62
      %s65 = sadd.s32 %s64, 1
      %p68 = scmp.eq.s32.totalorder %s16, 1
      %p69 = scmp.ne.s32.totalorder %s64, %s66
      %p70 = scmp.eq.s32.totalorder %s16, 0
      %p71 = por %p69, %p70
      %p72 = scmp.ne.s32.totalorder %s64, %s66
      %p73 = scmp.eq.s32.totalorder %s21, 1
      %p74 = por %p72, %p73
      %p75 = scmp.ne.s32.totalorder %s66, %s67
      %p76 = scmp.eq.s32.totalorder %s21, 0
      %p77 = por %p75, %p76
      %p78 = scmp.ne.s32.totalorder %s66, %s67
      %p79 = scmp.eq.s32.totalorder %s22, 1
      %p80 = por %p78, %p79
      %p82 = scmp.ne.s32.totalorder %s67, %s81
      %p83 = scmp.eq.s32.totalorder %s22, 0
      %p84 = por %p82, %p83
      %s86 = sadd.s32 %s85, 1
      %p89 = scmp.eq.s32.totalorder %s16, 1
      %p90 = scmp.ne.s32.totalorder %s85, %s87
      %p91 = scmp.eq.s32.totalorder %s16, 0
      %p92 = por %p90, %p91
      %p93 = scmp.ne.s32.totalorder %s85, %s87
      %p94 = scmp.eq.s32.totalorder %s21, 1
      %p95 = por %p93, %p94
      %p96 = scmp.ne.s32.totalorder %s87, %s88
      %p97 = scmp.eq.s32.totalorder %s21, 0
      %p98 = por %p96, %p97
      %p99 = scmp.ne.s32.totalorder %s87, %s88
      %p100 = scmp.eq.s32.totalorder %s22, 1
      %p101 = por %p99, %p100
      %p103 = scmp.ne.s32.totalorder %s88, %s102
      %p104 = scmp.eq.s32.totalorder %s22, 0
      %p105 = por %p103, %p104
      %s107 = sadd.s32 %s106, 1
      %p110 = scmp.eq.s32.totalorder %s16, 1
      %p111 = scmp.ne.s32.totalorder %s106, %s108
      %p112 = scmp.eq.s32.totalorder %s16, 0
      %p113 = por %p111, %p112
      %p114 = scmp.ne.s32.totalorder %s106, %s108
      %p115 = scmp.eq.s32.totalorder %s21, 1
      %p116 = por %p114, %p115
      %p117 = scmp.ne.s32.totalorder %s108, %s109
      %p118 = scmp.eq.s32.totalorder %s21, 0
      %p119 = por %p117, %p118
      %p120 = scmp.ne.s32.totalorder %s108, %s109
      %p121 = scmp.eq.s32.totalorder %s22, 1
      %p122 = por %p120, %p121
      %p124 = scmp.ne.s32.totalorder %s109, %s123
      %p125 = scmp.eq.s32.totalorder %s22, 0
      %p126 = por %p124, %p125
      %s127 = ssub.s32 %s23, %s35
      %s128 = ssub.s32 %s24, %s31
      %s129 = sor.u32 %s127, %s128
      %p130 = scmp.eq.s32.totalorder %s129, 0
      %s132 = sadd.s32 %s131, 1
      %s133 = scalar_select %p130, %s131, %s132
      %p136 = pneg %p130
      %p137 = scmp.eq.s32.totalorder %s16, 1
      %p138 = por %p136, %p137
      %p139 = scmp.ne.s32.totalorder %s131, %s134
      %p140 = scmp.eq.s32.totalorder %s16, 0
      %p141 = por %p139, %p140
      %p142 = scmp.ne.s32.totalorder %s131, %s134
      %p143 = scmp.eq.s32.totalorder %s21, 1
      %p144 = por %p142, %p143
      %p145 = scmp.ne.s32.totalorder %s134, %s135
      %p146 = scmp.eq.s32.totalorder %s21, 0
      %p147 = por %p145, %p146
      %p148 = scmp.ne.s32.totalorder %s134, %s135
      %p149 = scmp.eq.s32.totalorder %s22, 1
      %p150 = por %p148, %p149
      %p152 = scmp.ne.s32.totalorder %s135, %s151
      %p153 = scmp.eq.s32.totalorder %s22, 0
      %p154 = por %p152, %p153
      %p155 = scmp.le.s32.totalorder 1, %s16
      %p156 = scmp.lt.s32.totalorder %s16, 3
      %p157 = pnand %p155, %p156
      %p158 = pneg %p157
      // Predicated region
      $region9: #{tpu_custom_call.1} parent=5 // pred_check
        _
      $region10: #{tpu_custom_call.1} parent=5 // pred_check_branch
        %160 = sbr.rel (%p157) target = $region12
      $region11: #{tpu_custom_call.1} parent=5 // pred_region
        %s161 = ssub.s32 %s16, 1
        // Predicated region
        $region13: #{tpu_custom_call.1} parent=11 // pred_check
          %p162 = pneg %p77
        $region14: #{tpu_custom_call.1} parent=11 // pred_check_branch
          %164 = sbr.rel (%p162) target = $region16
        $region15: #{tpu_custom_call.1} parent=11 // pred_region
          _
        $region16: #{tpu_custom_call.1} parent=11 // pred_fallthru
          _
        // Predicated region
        $region17: #{tpu_custom_call.1} parent=11 // pred_check
          %p165 = pneg %p98
        $region18: #{tpu_custom_call.1} parent=11 // pred_check_branch
          %167 = sbr.rel (%p165) target = $region20
        $region19: #{tpu_custom_call.1} parent=11 // pred_region
          _
        $region20: #{tpu_custom_call.1} parent=11 // pred_fallthru
          _
        // Predicated region
        $region21: #{tpu_custom_call.1} parent=11 // pred_check
          %p168 = pneg %p119
        $region22: #{tpu_custom_call.1} parent=11 // pred_check_branch
          %170 = sbr.rel (%p168) target = $region24
        $region23: #{tpu_custom_call.1} parent=11 // pred_region
          _
        $region24: #{tpu_custom_call.1} parent=11 // pred_fallthru
          _
      $region12: #{tpu_custom_call.1} parent=5 // pred_fallthru
        _
      %p171 = scmp.lt.s32.totalorder %s16, 2
      // Predicated region
      $region25: #{tpu_custom_call.1} parent=5 // pred_check
        %p172 = pneg %p171
      $region26: #{tpu_custom_call.1} parent=5 // pred_check_branch
        %174 = sbr.rel (%p172) target = $region28
      $region27: #{tpu_custom_call.1} parent=5 // pred_region
        // Predicated region
        $region29: #{tpu_custom_call.1} parent=27 // pred_check
          %p175 = pneg %p50
        $region30: #{tpu_custom_call.1} parent=27 // pred_check_branch
          %177 = sbr.rel (%p175) target = $region32
        $region31: #{tpu_custom_call.1} parent=27 // pred_region
          %s178 = sand.u32 %s40, 1
          %s179 = scalar_lea.sflag [#allocation3], %s178
          %s180 = sand.u32 %s40, 1
          %s181 = smul.addr %s180, 64
          %s182 = scalar_lea.vmem [#allocation2], %s181
          %s183 = smul.u32 4, %s24
          %185 = vsyncadd %s179, 0
          %s186 = smul.addr %s183, 2
          %s187 = smul.addr %s23, 8
          %s188 = sadd.s32 %s186, %s187
          %s189 = smul.addr %s188, 8
          %s190 = scalar_lea.hbm %s0, %s189
          %s191 = sshll.u32 %s190, 4
          %s192 = int_to_ptr.hbm [resolvable:$true] %s191
          %s193 = sshll.u32 %s182, 4
          %s194 = int_to_ptr.vmem [resolvable:$true] %s193
          %199 = dma.hbm_to_vmem [thread:$0]  %s192, 1024, %s194, %s179, 256, 256, 16
        $region32: #{tpu_custom_call.1} parent=27 // pred_fallthru
          _
      $region28: #{tpu_custom_call.1} parent=5 // pred_fallthru
        _
      %p200 = scmp.le.s32.totalorder 1, %s16
      %p201 = scmp.lt.s32.totalorder %s16, 3
      %p202 = pnand %p200, %p201
      %p203 = pneg %p202
      // Predicated region
      $region33: #{tpu_custom_call.1} parent=5 // pred_check
        _
      $region34: #{tpu_custom_call.1} parent=5 // pred_check_branch
        %205 = sbr.rel (%p202) target = $region36
      $region35: #{tpu_custom_call.1} parent=5 // pred_region
        %s206 = ssub.s32 %s16, 1
        %s207 = sand.u32 %s43, 1
        %s208 = scalar_lea.sflag [#allocation3], %s207
        %s209 = sand.u32 %s43, 1
        %s210 = smul.addr %s209, 64
        %s211 = scalar_lea.vmem [#allocation2], %s210
        // Predicated region
        $region37: #{tpu_custom_call.1} parent=35 // pred_check
          %p212 = pneg %p56
        $region38: #{tpu_custom_call.1} parent=35 // pred_check_branch
          %214 = sbr.rel (%p212) target = $region40
        $region39: #{tpu_custom_call.1} parent=35 // pred_region
          %216 = dma.done %s208, 1024
        $region40: #{tpu_custom_call.1} parent=35 // pred_fallthru
          _
        %s217 = sand.u32 %s43, 1
        %s218 = scalar_lea.sflag [#allocation3], %s217
        %s219 = sand.u32 %s43, 1
        %s220 = smul.addr %s219, 64
        %s221 = scalar_lea.vmem [#allocation2], %s220
        %p222 = pneg %p56
        %p223 = pneg %p53
        %p224 = pneg %p77
        %p225 = pneg %p74
        %p226 = pneg %p98
        %p227 = pneg %p95
        %p228 = pneg %p119
        %p229 = pneg %p116
        %p230 = pneg %p147
        %p231 = pneg %p144
        %s232 = sand.u32 %s134, 1
        %s233 = scalar_lea.sflag [#allocation4], %s232
        %s234 = sand.u32 %s134, 1
        %s235 = smul.addr %s234, 64
        %s236 = scalar_lea.vmem [#allocation5], %s235
        %s237 = smul.u32 4, %s26
        %s238 = smul.u32 4, %s26
        %s239 = smul.u32 %s26, 4
        %v240 = vld [vmem:[%s211] sm:$0xff]
        %v241 = vld [vmem:[%s211 + $0x8] sm:$0xff]
        %v242 = vld [vmem:[%s211 + $0x10] sm:$0xff]
        %v243 = vld [vmem:[%s211 + $0x18] sm:$0xff]
        %v244 = vld [vmem:[%s211 + $0x20] sm:$0xff]
        %v245 = vld [vmem:[%s211 + $0x28] sm:$0xff]
        %v246 = vld [vmem:[%s211 + $0x30] sm:$0xff]
        %v247 = vld [vmem:[%s211 + $0x38] sm:$0xff]
        %v248 = vadd.f32 %v240, %v241
        %249 = vadd.xlane.f32.xlu0 %v248
        %v250 = vpop.xlane.xlu0 %249
        %v251 = vadd.f32 %v242, %v243
        %252 = vadd.xlane.f32.xlu0 %v251
        %v253 = vpop.xlane.xlu0 %252
        %v254 = vadd.f32 %v244, %v245
        %255 = vadd.xlane.f32.xlu0 %v254
        %v256 = vpop.xlane.xlu0 %255
        %v257 = vadd.f32 %v246, %v247
        %258 = vadd.xlane.f32.xlu0 %v257
        %v259 = vpop.xlane.xlu0 %258
        %v260 = vrot.slane %v250, 4
        %v261 = vadd.f32 %v250, %v260
        %v262 = vrot.slane %v261, 2
        %v263 = vadd.f32 %v261, %v262
        %v264 = vrot.slane %v263, 1
        %v265 = vadd.f32 %v263, %v264
        %v266 = vrot.slane %v253, 4
        %v267 = vadd.f32 %v253, %v266
        %v268 = vrot.slane %v267, 2
        %v269 = vadd.f32 %v267, %v268
        %v270 = vrot.slane %v269, 1
        %v271 = vadd.f32 %v269, %v270
        %v272 = vrot.slane %v256, 4
        %v273 = vadd.f32 %v256, %v272
        %v274 = vrot.slane %v273, 2
        %v275 = vadd.f32 %v273, %v274
        %v276 = vrot.slane %v275, 1
        %v277 = vadd.f32 %v275, %v276
        %v278 = vrot.slane %v259, 4
        %v279 = vadd.f32 %v259, %v278
        %v280 = vrot.slane %v279, 2
        %v281 = vadd.f32 %v279, %v280
        %v282 = vrot.slane %v281, 1
        %v283 = vadd.f32 %v281, %v282
        %v284 = vmul.f32 %v240, %v240
        %v285 = vmul.f32 %v241, %v241
        %v286 = vmul.f32 %v242, %v242
        %v287 = vmul.f32 %v243, %v243
        %v288 = vmul.f32 %v244, %v244
        %v289 = vmul.f32 %v245, %v245
        %v290 = vmul.f32 %v246, %v246
        %v291 = vmul.f32 %v247, %v247
        %v292 = vadd.f32 %v284, %v285
        %293 = vadd.xlane.f32.xlu0 %v292
        %v294 = vpop.xlane.xlu0 %293
        %v295 = vadd.f32 %v286, %v287
        %296 = vadd.xlane.f32.xlu0 %v295
        %v297 = vpop.xlane.xlu0 %296
        %v298 = vadd.f32 %v288, %v289
        %299 = vadd.xlane.f32.xlu0 %v298
        %v300 = vpop.xlane.xlu0 %299
        %v301 = vadd.f32 %v290, %v291
        %302 = vadd.xlane.f32.xlu0 %v301
        %v303 = vpop.xlane.xlu0 %302
        %v304 = vrot.slane %v294, 4
        %v305 = vadd.f32 %v294, %v304
        %v306 = vrot.slane %v305, 2
        %v307 = vadd.f32 %v305, %v306
        %v308 = vrot.slane %v307, 1
        %v309 = vadd.f32 %v307, %v308
        %v310 = vrot.slane %v297, 4
        %v311 = vadd.f32 %v297, %v310
        %v312 = vrot.slane %v311, 2
        %v313 = vadd.f32 %v311, %v312
        %v314 = vrot.slane %v313, 1
        %v315 = vadd.f32 %v313, %v314
        %v316 = vrot.slane %v300, 4
        %v317 = vadd.f32 %v300, %v316
        %v318 = vrot.slane %v317, 2
        %v319 = vadd.f32 %v317, %v318
        %v320 = vrot.slane %v319, 1
        %v321 = vadd.f32 %v319, %v320
        %v322 = vrot.slane %v303, 4
        %v323 = vadd.f32 %v303, %v322
        %v324 = vrot.slane %v323, 2
        %v325 = vadd.f32 %v323, %v324
        %v326 = vrot.slane %v325, 1
        %v327 = vadd.f32 %v325, %v326
        %v328 = vmul.f32 %v265, %v265
        %v329 = vmul.f32 %v271, %v271
        %v330 = vmul.f32 %v277, %v277
        %v331 = vmul.f32 %v283, %v283
        %v332 = vrcp.pop 2048.0
        %v333 = vmul.f32 2048.0, %v332
        %v334 = vsub.f32 1.0, %v333
        %v335 = vmul.f32 %v332, %v334
        %v336 = vadd.f32 %v332, %v335
        %vm337 = vweird.f32 %v332
        %v338 = vsel %vm337, %v332, %v336
        %v339 = vmul.f32 %v328, %v338
        %v340 = vmul.f32 %v329, %v338
        %v341 = vmul.f32 %v330, %v338
        %v342 = vmul.f32 %v331, %v338
        %v343 = vsub.f32 %v309, %v339
        %v344 = vsub.f32 %v315, %v340
        %v345 = vsub.f32 %v321, %v341
        %v346 = vsub.f32 %v327, %v342
        %v347 = vrcp.pop 2047.0
        %v348 = vmul.f32 2047.0, %v347
        %v349 = vsub.f32 1.0, %v348
        %v350 = vmul.f32 %v347, %v349
        %v351 = vadd.f32 %v347, %v350
        %vm352 = vweird.f32 %v347
        %v353 = vsel %vm352, %v347, %v351
        %v354 = vmul.f32 %v343, %v353
        %v355 = vmul.f32 %v344, %v353
        %v356 = vmul.f32 %v345, %v353
        %v357 = vmul.f32 %v346, %v353
        %v358 = vmax.f32 %v354, 0.0
        %v359 = vmax.f32 %v355, 0.0
        %v360 = vmax.f32 %v356, 0.0
        %v361 = vmax.f32 %v357, 0.0
        %v362 = vadd.f32 %v358, 1e-05
        %v363 = vadd.f32 %v359, 1e-05
        %v364 = vadd.f32 %v360, 1e-05
        %v365 = vadd.f32 %v361, 1e-05
        %v366 = vrsqrt.pop %v362
        %v367 = vmul.f32 %v366, %v362
        %v368 = vmul.f32 %v367, %v366
        %v369 = vmul.f32 0.5, %v368
        %v370 = vsub.f32 1.5, %v369
        %v371 = vmul.f32 %v366, %v370
        %vm372 = vweird.f32 %v362
        %vm373 = vweird.f32 %v366
        %vm374 = vmor %vm372, %vm373
        %v375 = vsel %vm374, %v366, %v371
        %v376 = vrsqrt.pop %v363
        %v377 = vmul.f32 %v376, %v363
        %v378 = vmul.f32 %v377, %v376
        %v379 = vmul.f32 0.5, %v378
        %v380 = vsub.f32 1.5, %v379
        %v381 = vmul.f32 %v376, %v380
        %vm382 = vweird.f32 %v363
        %vm383 = vweird.f32 %v376
        %vm384 = vmor %vm382, %vm383
        %v385 = vsel %vm384, %v376, %v381
        %v386 = vrsqrt.pop %v364
        %v387 = vmul.f32 %v386, %v364
        %v388 = vmul.f32 %v387, %v386
        %v389 = vmul.f32 0.5, %v388
        %v390 = vsub.f32 1.5, %v389
        %v391 = vmul.f32 %v386, %v390
        %vm392 = vweird.f32 %v364
        %vm393 = vweird.f32 %v386
        %vm394 = vmor %vm392, %vm393
        %v395 = vsel %vm394, %v386, %v391
        %v396 = vrsqrt.pop %v365
        %v397 = vmul.f32 %v396, %v365
        %v398 = vmul.f32 %v397, %v396
        %v399 = vmul.f32 0.5, %v398
        %v400 = vsub.f32 1.5, %v399
        %v401 = vmul.f32 %v396, %v400
        %vm402 = vweird.f32 %v365
        %vm403 = vweird.f32 %v396
        %vm404 = vmor %vm402, %vm403
        %v405 = vsel %vm404, %v396, %v401
        %s406 = smul.u32 %s239, 8
        %s407 = scalar_lea.vmem %s1, %s406
        %v408 = vld [vmem:[%s407] sm:$0xff]
        %v409 = vld [vmem:[%s407 + $0x8] sm:$0xff]
        %v410 = vld [vmem:[%s407 + $0x10] sm:$0xff]
        %v411 = vld [vmem:[%s407 + $0x18] sm:$0xff]
        %s412 = scalar_lea.vmem %s2, %s406
        %v413 = vld [vmem:[%s412] sm:$0xff]
        %v414 = vld [vmem:[%s412 + $0x8] sm:$0xff]
        %v415 = vld [vmem:[%s412 + $0x10] sm:$0xff]
        %v416 = vld [vmem:[%s412 + $0x18] sm:$0xff]
        %s417 = scalar_lea.vmem %s3, %s406
        %v418 = vld [vmem:[%s417] sm:$0xff]
        %v419 = vld [vmem:[%s417 + $0x8] sm:$0xff]
        %v420 = vld [vmem:[%s417 + $0x10] sm:$0xff]
        %v421 = vld [vmem:[%s417 + $0x18] sm:$0xff]
        %v422 = vmul.f32 %v413, %v375
        %v423 = vmul.f32 %v414, %v385
        %v424 = vmul.f32 %v415, %v395
        %v425 = vmul.f32 %v416, %v405
        %427 = vset.pattern.permute.xlu0 0
        %428 = vperm.xlu0 %427, %v408
        %v429 = vpop.permute.xlu0 %428
        %432 = vset.pattern.permute.xlu0 0
        %433 = vperm.xlu0 %432, %v409
        %v434 = vpop.permute.xlu0 %433
        %437 = vset.pattern.permute.xlu0 0
        %438 = vperm.xlu0 %437, %v410
        %v439 = vpop.permute.xlu0 %438
        %442 = vset.pattern.permute.xlu0 0
        %443 = vperm.xlu0 %442, %v411
        %v444 = vpop.permute.xlu0 %443
        %v446 = vmul.f32 %v429, %v240
        %v447 = vmul.f32 %v429, %v241
        %v448 = vmul.f32 %v434, %v242
        %v449 = vmul.f32 %v434, %v243
        %v450 = vmul.f32 %v439, %v244
        %v451 = vmul.f32 %v439, %v245
        %v452 = vmul.f32 %v444, %v246
        %v453 = vmul.f32 %v444, %v247
        %v454 = vxor.u32 %v446, 2147483648
        %v455 = vxor.u32 %v447, 2147483648
        %v456 = vxor.u32 %v448, 2147483648
        %v457 = vxor.u32 %v449, 2147483648
        %v458 = vxor.u32 %v450, 2147483648
        %v459 = vxor.u32 %v451, 2147483648
        %v460 = vxor.u32 %v452, 2147483648
        %v461 = vxor.u32 %v453, 2147483648
        %v462 = vmul.f32 %v454, 1.442695
        %v463 = vpow.pop %v462
        %v464 = vmul.f32 %v455, 1.442695
        %v465 = vpow.pop %v464
        %v466 = vmul.f32 %v456, 1.442695
        %v467 = vpow.pop %v466
        %v468 = vmul.f32 %v457, 1.442695
        %v469 = vpow.pop %v468
        %v470 = vmul.f32 %v458, 1.442695
        %v471 = vpow.pop %v470
        %v472 = vmul.f32 %v459, 1.442695
        %v473 = vpow.pop %v472
        %v474 = vmul.f32 %v460, 1.442695
        %v475 = vpow.pop %v474
        %v476 = vmul.f32 %v461, 1.442695
        %v477 = vpow.pop %v476
        %v478 = vadd.f32 %v463, 1.0
        %v479 = vadd.f32 %v465, 1.0
        %v480 = vadd.f32 %v467, 1.0
        %v481 = vadd.f32 %v469, 1.0
        %v482 = vadd.f32 %v471, 1.0
        %v483 = vadd.f32 %v473, 1.0
        %v484 = vadd.f32 %v475, 1.0
        %v485 = vadd.f32 %v477, 1.0
        %v486 = vrcp.pop %v478
        %v487 = vmul.f32 %v478, %v486
        %v488 = vsub.f32 1.0, %v487
        %v489 = vmul.f32 %v486, %v488
        %v490 = vadd.f32 %v486, %v489
        %vm491 = vweird.f32 %v478
        %vm492 = vweird.f32 %v486
        %vm493 = vmor %vm491, %vm492
        %v494 = vsel %vm493, %v486, %v490
        %v495 = vand.u32 2147483647, %v478
        %vm496 = vcmp.eq.f32.partialorder %v495, 8.507059e+37
        %v497 = vand.u32 %v478, 2147483648
        %v498 = vor.u32 1.1754944e-38, %v497
        %v499 = vsel %vm496, %v498, %v494
        %v500 = vmul.f32 1.0, %v499
        %v501 = vrcp.pop %v479
        %v502 = vmul.f32 %v479, %v501
        %v503 = vsub.f32 1.0, %v502
        %v504 = vmul.f32 %v501, %v503
        %v505 = vadd.f32 %v501, %v504
        %vm506 = vweird.f32 %v479
        %vm507 = vweird.f32 %v501
        %vm508 = vmor %vm506, %vm507
        %v509 = vsel %vm508, %v501, %v505
        %v510 = vand.u32 2147483647, %v479
        %vm511 = vcmp.eq.f32.partialorder %v510, 8.507059e+37
        %v512 = vand.u32 %v479, 2147483648
        %v513 = vor.u32 1.1754944e-38, %v512
        %v514 = vsel %vm511, %v513, %v509
        %v515 = vmul.f32 1.0, %v514
        %v516 = vrcp.pop %v480
        %v517 = vmul.f32 %v480, %v516
        %v518 = vsub.f32 1.0, %v517
        %v519 = vmul.f32 %v516, %v518
        %v520 = vadd.f32 %v516, %v519
        %vm521 = vweird.f32 %v480
        %vm522 = vweird.f32 %v516
        %vm523 = vmor %vm521, %vm522
        %v524 = vsel %vm523, %v516, %v520
        %v525 = vand.u32 2147483647, %v480
        %vm526 = vcmp.eq.f32.partialorder %v525, 8.507059e+37
        %v527 = vand.u32 %v480, 2147483648
        %v528 = vor.u32 1.1754944e-38, %v527
        %v529 = vsel %vm526, %v528, %v524
        %v530 = vmul.f32 1.0, %v529
        %v531 = vrcp.pop %v481
        %v532 = vmul.f32 %v481, %v531
        %v533 = vsub.f32 1.0, %v532
        %v534 = vmul.f32 %v531, %v533
        %v535 = vadd.f32 %v531, %v534
        %vm536 = vweird.f32 %v481
        %vm537 = vweird.f32 %v531
        %vm538 = vmor %vm536, %vm537
        %v539 = vsel %vm538, %v531, %v535
        %v540 = vand.u32 2147483647, %v481
        %vm541 = vcmp.eq.f32.partialorder %v540, 8.507059e+37
        %v542 = vand.u32 %v481, 2147483648
        %v543 = vor.u32 1.1754944e-38, %v542
        %v544 = vsel %vm541, %v543, %v539
        %v545 = vmul.f32 1.0, %v544
        %v546 = vrcp.pop %v482
        %v547 = vmul.f32 %v482, %v546
        %v548 = vsub.f32 1.0, %v547
        %v549 = vmul.f32 %v546, %v548
        %v550 = vadd.f32 %v546, %v549
        %vm551 = vweird.f32 %v482
        %vm552 = vweird.f32 %v546
        %vm553 = vmor %vm551, %vm552
        %v554 = vsel %vm553, %v546, %v550
        %v555 = vand.u32 2147483647, %v482
        %vm556 = vcmp.eq.f32.partialorder %v555, 8.507059e+37
        %v557 = vand.u32 %v482, 2147483648
        %v558 = vor.u32 1.1754944e-38, %v557
        %v559 = vsel %vm556, %v558, %v554
        %v560 = vmul.f32 1.0, %v559
        %v561 = vrcp.pop %v483
        %v562 = vmul.f32 %v483, %v561
        %v563 = vsub.f32 1.0, %v562
        %v564 = vmul.f32 %v561, %v563
        %v565 = vadd.f32 %v561, %v564
        %vm566 = vweird.f32 %v483
        %vm567 = vweird.f32 %v561
        %vm568 = vmor %vm566, %vm567
        %v569 = vsel %vm568, %v561, %v565
        %v570 = vand.u32 2147483647, %v483
        %vm571 = vcmp.eq.f32.partialorder %v570, 8.507059e+37
        %v572 = vand.u32 %v483, 2147483648
        %v573 = vor.u32 1.1754944e-38, %v572
        %v574 = vsel %vm571, %v573, %v569
        %v575 = vmul.f32 1.0, %v574
        %v576 = vrcp.pop %v484
        %v577 = vmul.f32 %v484, %v576
        %v578 = vsub.f32 1.0, %v577
        %v579 = vmul.f32 %v576, %v578
        %v580 = vadd.f32 %v576, %v579
        %vm581 = vweird.f32 %v484
        %vm582 = vweird.f32 %v576
        %vm583 = vmor %vm581, %vm582
        %v584 = vsel %vm583, %v576, %v580
        %v585 = vand.u32 2147483647, %v484
        %vm586 = vcmp.eq.f32.partialorder %v585, 8.507059e+37
        %v587 = vand.u32 %v484, 2147483648
        %v588 = vor.u32 1.1754944e-38, %v587
        %v589 = vsel %vm586, %v588, %v584
        %v590 = vmul.f32 1.0, %v589
        %v591 = vrcp.pop %v485
        %v592 = vmul.f32 %v485, %v591
        %v593 = vsub.f32 1.0, %v592
        %v594 = vmul.f32 %v591, %v593
        %v595 = vadd.f32 %v591, %v594
        %vm596 = vweird.f32 %v485
        %vm597 = vweird.f32 %v591
        %vm598 = vmor %vm596, %vm597
        %v599 = vsel %vm598, %v591, %v595
        %v600 = vand.u32 2147483647, %v485
        %vm601 = vcmp.eq.f32.partialorder %v600, 8.507059e+37
        %v602 = vand.u32 %v485, 2147483648
        %v603 = vor.u32 1.1754944e-38, %v602
        %v604 = vsel %vm601, %v603, %v599
        %v605 = vmul.f32 1.0, %v604
        %v606 = vmul.f32 %v240, %v500
        %v607 = vmul.f32 %v241, %v515
        %v608 = vmul.f32 %v242, %v530
        %v609 = vmul.f32 %v243, %v545
        %v610 = vmul.f32 %v244, %v560
        %v611 = vmul.f32 %v245, %v575
        %v612 = vmul.f32 %v246, %v590
        %v613 = vmul.f32 %v247, %v605
        %615 = vset.pattern.permute.xlu0 0
        %616 = vperm.xlu0 %615, %v422
        %v617 = vpop.permute.xlu0 %616
        %620 = vset.pattern.permute.xlu0 0
        %621 = vperm.xlu0 %620, %v423
        %v622 = vpop.permute.xlu0 %621
        %625 = vset.pattern.permute.xlu0 0
        %626 = vperm.xlu0 %625, %v424
        %v627 = vpop.permute.xlu0 %626
        %630 = vset.pattern.permute.xlu0 0
        %631 = vperm.xlu0 %630, %v425
        %v632 = vpop.permute.xlu0 %631
        %v634 = vmul.f32 %v606, %v617
        %v635 = vmul.f32 %v607, %v617
        %v636 = vmul.f32 %v608, %v622
        %v637 = vmul.f32 %v609, %v622
        %v638 = vmul.f32 %v610, %v627
        %v639 = vmul.f32 %v611, %v627
        %v640 = vmul.f32 %v612, %v632
        %v641 = vmul.f32 %v613, %v632
        %643 = vset.pattern.permute.xlu0 0
        %644 = vperm.xlu0 %643, %v418
        %v645 = vpop.permute.xlu0 %644
        %648 = vset.pattern.permute.xlu0 0
        %649 = vperm.xlu0 %648, %v419
        %v650 = vpop.permute.xlu0 %649
        %653 = vset.pattern.permute.xlu0 0
        %654 = vperm.xlu0 %653, %v420
        %v655 = vpop.permute.xlu0 %654
        %658 = vset.pattern.permute.xlu0 0
        %659 = vperm.xlu0 %658, %v421
        %v660 = vpop.permute.xlu0 %659
        %v662 = vadd.f32 %v634, %v645
        %v663 = vadd.f32 %v635, %v645
        %v664 = vadd.f32 %v636, %v650
        %v665 = vadd.f32 %v637, %v650
        %v666 = vadd.f32 %v638, %v655
        %v667 = vadd.f32 %v639, %v655
        %v668 = vadd.f32 %v640, %v660
        %v669 = vadd.f32 %v641, %v660
        %670 = vst [vmem:[%s236] sm:$0xff] %v662
        %671 = vst [vmem:[%s236 + $0x8] sm:$0xff] %v663
        %672 = vst [vmem:[%s236 + $0x10] sm:$0xff] %v664
        %673 = vst [vmem:[%s236 + $0x18] sm:$0xff] %v665
        %674 = vst [vmem:[%s236 + $0x20] sm:$0xff] %v666
        %675 = vst [vmem:[%s236 + $0x28] sm:$0xff] %v667
        %676 = vst [vmem:[%s236 + $0x30] sm:$0xff] %v668
        %677 = vst [vmem:[%s236 + $0x38] sm:$0xff] %v669
        %s678 = sand.u32 %s134, 1
        %s679 = scalar_lea.sflag [#allocation4], %s678
        %s680 = sand.u32 %s134, 1
        %s681 = smul.addr %s680, 64
        %s682 = scalar_lea.vmem [#allocation5], %s681
        // Predicated region
        $region41: #{tpu_custom_call.1} parent=35 // pred_check
          %p683 = pneg %p144
        $region42: #{tpu_custom_call.1} parent=35 // pred_check_branch
          %685 = sbr.rel (%p683) target = $region44
        $region43: #{tpu_custom_call.1} parent=35 // pred_region
          %s686 = smul.u32 4, %s26
          %688 = vsyncadd %s679, 0
          %s689 = smul.addr %s686, 2
          %s690 = smul.addr %s25, 8
          %s691 = sadd.s32 %s689, %s690
          %s692 = smul.addr %s691, 8
          %s693 = scalar_lea.hbm %s4, %s692
          %s694 = sshll.u32 %s682, 4
          %s695 = int_to_ptr.vmem [resolvable:$true] %s694
          %s696 = sshll.u32 %s693, 4
          %s697 = int_to_ptr.hbm [resolvable:$true] %s696
          %702 = dma.vmem_to_hbm [thread:$0]  %s695, 1024, %s697, %s679, 256, 256, 16
        $region44: #{tpu_custom_call.1} parent=35 // pred_fallthru
          _
      $region36: #{tpu_custom_call.1} parent=5 // pred_fallthru
        _
      %p703 = scmp.le.s32.totalorder 2, %s16
      // Predicated region
      $region45: #{tpu_custom_call.1} parent=5 // pred_check
        %p704 = pneg %p703
      $region46: #{tpu_custom_call.1} parent=5 // pred_check_branch
        %706 = sbr.rel (%p704) target = $region48
      $region47: #{tpu_custom_call.1} parent=5 // pred_region
        %s707 = ssub.s32 %s16, 2
        // Predicated region
        $region49: #{tpu_custom_call.1} parent=47 // pred_check
          %p708 = pneg %p150
        $region50: #{tpu_custom_call.1} parent=47 // pred_check_branch
          %710 = sbr.rel (%p708) target = $region52
        $region51: #{tpu_custom_call.1} parent=47 // pred_region
          %s711 = sand.u32 %s135, 1
          %s712 = scalar_lea.sflag [#allocation4], %s711
          %s713 = sand.u32 %s135, 1
          %s714 = smul.addr %s713, 64
          %s715 = scalar_lea.vmem [#allocation5], %s714
          %717 = dma.done %s712, 1024
        $region52: #{tpu_custom_call.1} parent=47 // pred_fallthru
          _
      $region48: #{tpu_custom_call.1} parent=5 // pred_fallthru
        _
    $region6: #{tpu_custom_call.1} parent=1 // loop_footer
      %s20 = sadd.s32 1, %s16
    $region7: #{tpu_custom_call.1} parent=1 // loop_footer_branch
      %15 = sbr.rel target = $region3
    $region8: #{tpu_custom_call.1} parent=1 // loop_exit
      _
    %718 = vsyncpa [#allocation3], 1
    %s719 = scalar_lea.sflag [#allocation3], 1
    %720 = vsyncpa %s719, 1
    %721 = vsyncpa [#allocation4], 1
    %s722 = scalar_lea.sflag [#allocation4], 1
    %723 = vsyncpa %s722, 1

</llo_original>
